<compile_context>
chip_gen: v7x
topology: tpu7x:2x2x1
jax: 0.10.0
libtpu: 0.0.40
codegen_flags: <defaults>
</compile_context>

<pallas_src>
import jax
import jax.numpy as jnp
from jax.experimental import pallas as pl
from jax.experimental.pallas import tpu as pltpu


def _round_up(x: int, m: int) -> int:
    return (x + m - 1) // m * m


def _cdiv(a: int, b: int) -> int:
    return -(-a // b)


def _deep_kernel(x_ref, w1_ref, b1_ref, w2_ref, b2_ref,
                 w3_ref, b3_ref, w4_ref, b4_ref, o_ref):
    # All four layers fused; intermediates never leave VMEM/vregs.
    x = x_ref[...]

    h = jnp.tanh(jnp.dot(x, w1_ref[...], preferred_element_type=jnp.float32) + b1_ref[...])
    h = jnp.tanh(jnp.dot(h, w2_ref[...], preferred_element_type=jnp.float32) + b2_ref[...])
    h = jnp.tanh(jnp.dot(h, w3_ref[...], preferred_element_type=jnp.float32) + b3_ref[...])
    # (The three full-tile tanh + sigmoid all funnel through the single EUP slot; at
    # small/mid H that unit, not the MXU, is the expected binding unit.)

    # Output layer has a single output column: elementwise multiply + cross-lane
    # reduction (VPU/XLU) instead of an N=1 MXU pass, then one XLU transpose to a
    # (1, tm) lane-dense vector so the store is unmasked / lane-dense.
    z = jnp.sum(h * w4_ref[...], axis=-1, keepdims=True)          # (tm, 1)
    z = jnp.transpose(z) + b4_ref[0, 0]                           # (1, tm) lane vector
    o_ref[...] = jax.nn.sigmoid(z)


def prepare_params(params):
    """Pad/transpose params into kernel layout ONCE (launch-invariant).

    Returns: w1 (D_in,H_pad), b1..b3 (1,H_pad), w2/w3 (H_pad,H_pad), w4 (1,H_pad),
    b4 (1,1). Zero-padding is numerically exact: padded activations are tanh(0)=0 and
    meet zero weight rows/columns.
    """
    H = params["w1"].shape[1]
    H_pad = _round_up(H, 128)

    def pad_cols(a):
        return jnp.pad(a, ((0, 0), (0, H_pad - a.shape[1])))

    def pad_rows(a):
        return jnp.pad(a, ((0, H_pad - a.shape[0]), (0, 0)))

    return dict(
        w1=pad_cols(params["w1"]), b1=pad_cols(params["b1"]),
        w2=pad_cols(pad_rows(params["w2"])), b2=pad_cols(params["b2"]),
        w3=pad_cols(pad_rows(params["w3"])), b3=pad_cols(params["b3"]),
        w4=pad_cols(params["w4"].T),          # (1, H_pad) row vector for the VPU reduce
        b4=params["b4"],                       # (1, 1) scalar -> SMEM
    )


def deep_forward(x, kparams, *, tile_m: int = 512):
    """x: (B, D_in) f32. kparams: output of prepare_params()."""
    B, d_in = x.shape
    w1, b1 = kparams["w1"], kparams["b1"]
    w2, b2 = kparams["w2"], kparams["b2"]
    w3, b3 = kparams["w3"], kparams["b3"]
    w4, b4 = kparams["w4"], kparams["b4"]
    assert w1.shape[0] == d_in

    # Balanced batch tiling, no materialized padding of x.
    if B <= tile_m:
        tm = B                                  # single tile; block == full array
    else:
        n_target = _cdiv(B, tile_m)             # balanced tiles (keeps both v7x TCs busy)
        tm = _round_up(_cdiv(B, n_target), 8)
    n_tiles = _cdiv(B, tm)

    vmem = pltpu.MemorySpace.VMEM
    x_spec = pl.BlockSpec((tm, d_in), lambda i: (i, 0), memory_space=vmem)

    def resident(a):
        # Constant block index -> weight/bias tile stays VMEM-resident across grid steps.
        return pl.BlockSpec(a.shape, lambda i: (0, 0), memory_space=vmem)

    # Lane-dense output: (n_tiles, 1, tm), one (1, tm) row per grid step.
    out_spec = pl.BlockSpec((None, 1, tm), lambda i: (i, 0, 0), memory_space=vmem)

    # Explicit VMEM budget: 2x-buffered weights + streamed x/out tiles + headroom.
    def nbytes(a):
        return a.size * a.dtype.itemsize

    weight_bytes = sum(nbytes(a) for a in (w1, b1, w2, b2, w3, b3, w4))
    stream_bytes = (tm * d_in + tm) * 4
    vmem_limit = min(int(2 * weight_bytes + 2 * stream_bytes) + (16 << 20), 100 << 20)

    out = pl.pallas_call(
        _deep_kernel,
        out_shape=jax.ShapeDtypeStruct((n_tiles, 1, tm), jnp.float32),
        grid=(n_tiles,),
        in_specs=[x_spec,
                  resident(w1), resident(b1),
                  resident(w2), resident(b2),
                  resident(w3), resident(b3),
                  resident(w4),
                  pl.BlockSpec(memory_space=pltpu.MemorySpace.SMEM)],
        out_specs=out_spec,
        compiler_params=pltpu.CompilerParams(
            dimension_semantics=("parallel",),
            vmem_limit_bytes=vmem_limit),
    )(x, w1, b1, w2, b2, w3, b3, w4, b4)

    # (n_tiles, 1, tm) row-major == batch order; drop any ragged-edge garbage rows.
    return out.reshape(n_tiles * tm, 1)[:B]


def init_params(key, input_dim, hidden_dim):
    """Deterministic init mimicking torch.nn.Linear's U(-1/sqrt(fan_in), +1/sqrt(fan_in))."""
    ks = jax.random.split(key, 8)

    def linear(kw, kb, fan_in, fan_out):
        bound = 1.0 / jnp.sqrt(fan_in)
        w = jax.random.uniform(kw, (fan_in, fan_out), jnp.float32, -bound, bound)
        b = jax.random.uniform(kb, (1, fan_out), jnp.float32, -bound, bound)
        return w, b

    w1, b1 = linear(ks[0], ks[1], input_dim, hidden_dim)
    w2, b2 = linear(ks[2], ks[3], hidden_dim, hidden_dim)
    w3, b3 = linear(ks[4], ks[5], hidden_dim, hidden_dim)
    w4, b4 = linear(ks[6], ks[7], hidden_dim, 1)
    return dict(w1=w1, b1=b1, w2=w2, b2=b2, w3=w3, b3=b3, w4=w4, b4=b4)


def deep_ref(x, p):
    """Pure-JAX reference (unpadded) for correctness checking."""
    h = jnp.tanh(x @ p["w1"] + p["b1"])
    h = jnp.tanh(h @ p["w2"] + p["b2"])
    h = jnp.tanh(h @ p["w3"] + p["b3"])
    return jax.nn.sigmoid(h @ p["w4"] + p["b4"])


if __name__ == "__main__":
    key = jax.random.PRNGKey(0)
    k_x, k_p, k_x2, k_x3 = jax.random.split(key, 4)

    batch, input_dim, hidden_dim = 8, 32, 32
    x = jax.random.normal(k_x, (batch, input_dim), jnp.float32)
    params = init_params(k_p, input_dim, hidden_dim)
    kparams = prepare_params(params)   # pad weights once, launch-invariant

    out = jax.block_until_ready(deep_forward(x, kparams))
    ref = deep_ref(x, params)
    assert out.shape == (batch, 1), out.shape
    assert jnp.allclose(out, ref, atol=2e-5, rtol=2e-5), \
        f"max err {jnp.max(jnp.abs(out - ref))}"

    # Multi-tile balanced path + ragged final block, no jnp.pad of x
    # (B=600 -> two 304-row tiles; previously one 512 tile + one 83%-padding tile).
    x2 = jax.random.normal(k_x2, (600, input_dim), jnp.float32)
    out2 = jax.block_until_ready(deep_forward(x2, kparams))
    ref2 = deep_ref(x2, params)
    assert out2.shape == (600, 1), out2.shape
    assert jnp.allclose(out2, ref2, atol=2e-5, rtol=2e-5), \
        f"max err {jnp.max(jnp.abs(out2 - ref2))}"

    # Tiny non-multiple-of-8 batch: single full-array tile, no alignment padding needed.
    x3 = jax.random.normal(k_x3, (5, input_dim), jnp.float32)
    out3 = jax.block_until_ready(deep_forward(x3, kparams))
    ref3 = deep_ref(x3, params)
    assert out3.shape == (5, 1), out3.shape
    assert jnp.allclose(out3, ref3, atol=2e-5, rtol=2e-5), \
        f"max err {jnp.max(jnp.abs(out3 - ref3))}"

    print("KERNEL_OK")
</pallas_src>

<mosaic_0001>
module attributes {stable_mosaic.version = 11 : i64} {
  func.func @_deep_kernel(%arg0: i32, %arg1: memref<8x32xf32, #tpu.memory_space<vmem>>, %arg2: memref<32x128xf32, #tpu.memory_space<vmem>>, %arg3: memref<1x128xf32, #tpu.memory_space<vmem>>, %arg4: memref<128x128xf32, #tpu.memory_space<vmem>>, %arg5: memref<1x128xf32, #tpu.memory_space<vmem>>, %arg6: memref<128x128xf32, #tpu.memory_space<vmem>>, %arg7: memref<1x128xf32, #tpu.memory_space<vmem>>, %arg8: memref<1x128xf32, #tpu.memory_space<vmem>>, %arg9: memref<1x1xf32, #tpu.memory_space<smem>>, %arg10: memref<1x1x8xf32, #tpu.memory_space<vmem>>) attributes {dimension_semantics = [#tpu.dimension_semantics<parallel>], iteration_bounds = array<i64: 1>, scalar_prefetch = 0 : i64, scratch_operands = 0 : i64, tpu.core_type = #tpu.core_type<tc>, window_params = [{transform_indices = @transform_0, window_bounds = array<i64: 8, 32>}, {pipeline_mode = #tpu.pipeline_mode<synchronous>, transform_indices = @transform_1, window_bounds = array<i64: 32, 128>}, {pipeline_mode = #tpu.pipeline_mode<synchronous>, transform_indices = @transform_2, window_bounds = array<i64: 1, 128>}, {pipeline_mode = #tpu.pipeline_mode<synchronous>, transform_indices = @transform_3, window_bounds = array<i64: 128, 128>}, {pipeline_mode = #tpu.pipeline_mode<synchronous>, transform_indices = @transform_4, window_bounds = array<i64: 1, 128>}, {pipeline_mode = #tpu.pipeline_mode<synchronous>, transform_indices = @transform_5, window_bounds = array<i64: 128, 128>}, {pipeline_mode = #tpu.pipeline_mode<synchronous>, transform_indices = @transform_6, window_bounds = array<i64: 1, 128>}, {pipeline_mode = #tpu.pipeline_mode<synchronous>, transform_indices = @transform_7, window_bounds = array<i64: 1, 128>}, {transform_indices = @transform_8, window_bounds = array<i64: 1, 1>}, {transform_indices = @transform_9, window_bounds = array<i64: 1, 1, 8>}]} {
    %c0 = arith.constant 0 : index
    %c0_0 = arith.constant 0 : index
    %0 = vector.load %arg1[%c0, %c0_0] : memref<8x32xf32, #tpu.memory_space<vmem>>, vector<8x32xf32>
    %c0_1 = arith.constant 0 : index
    %c0_2 = arith.constant 0 : index
    %1 = vector.load %arg2[%c0_1, %c0_2] : memref<32x128xf32, #tpu.memory_space<vmem>>, vector<32x128xf32>
    %cst = arith.constant dense<0.000000e+00> : vector<8x128xf32>
    %2 = tpu.matmul %0, %1, %cst {dimension_numbers = #tpu.dot_dimension_numbers<[1], [0], [0], [1], [0, 0, 1, 1], [], []>} : vector<8x32xf32>, vector<32x128xf32>, vector<8x128xf32> -> vector<8x128xf32>
    %c0_3 = arith.constant 0 : index
    %c0_4 = arith.constant 0 : index
    %3 = vector.load %arg3[%c0_3, %c0_4] : memref<1x128xf32, #tpu.memory_space<vmem>>, vector<1x128xf32>
    %4 = vector.broadcast %3 : vector<1x128xf32> to vector<8x128xf32>
    %5 = arith.addf %2, %4 : vector<8x128xf32>
    %6 = math.tanh %5 : vector<8x128xf32>
    %c0_5 = arith.constant 0 : index
    %c0_6 = arith.constant 0 : index
    %7 = vector.load %arg4[%c0_5, %c0_6] : memref<128x128xf32, #tpu.memory_space<vmem>>, vector<128x128xf32>
    %cst_7 = arith.constant dense<0.000000e+00> : vector<8x128xf32>
    %8 = tpu.matmul %6, %7, %cst_7 {dimension_numbers = #tpu.dot_dimension_numbers<[1], [0], [0], [1], [0, 0, 1, 1], [], []>} : vector<8x128xf32>, vector<128x128xf32>, vector<8x128xf32> -> vector<8x128xf32>
    %c0_8 = arith.constant 0 : index
    %c0_9 = arith.constant 0 : index
    %9 = vector.load %arg5[%c0_8, %c0_9] : memref<1x128xf32, #tpu.memory_space<vmem>>, vector<1x128xf32>
    %10 = vector.broadcast %9 : vector<1x128xf32> to vector<8x128xf32>
    %11 = arith.addf %8, %10 : vector<8x128xf32>
    %12 = math.tanh %11 : vector<8x128xf32>
    %c0_10 = arith.constant 0 : index
    %c0_11 = arith.constant 0 : index
    %13 = vector.load %arg6[%c0_10, %c0_11] : memref<128x128xf32, #tpu.memory_space<vmem>>, vector<128x128xf32>
    %cst_12 = arith.constant dense<0.000000e+00> : vector<8x128xf32>
    %14 = tpu.matmul %12, %13, %cst_12 {dimension_numbers = #tpu.dot_dimension_numbers<[1], [0], [0], [1], [0, 0, 1, 1], [], []>} : vector<8x128xf32>, vector<128x128xf32>, vector<8x128xf32> -> vector<8x128xf32>
    %c0_13 = arith.constant 0 : index
    %c0_14 = arith.constant 0 : index
    %15 = vector.load %arg7[%c0_13, %c0_14] : memref<1x128xf32, #tpu.memory_space<vmem>>, vector<1x128xf32>
    %16 = vector.broadcast %15 : vector<1x128xf32> to vector<8x128xf32>
    %17 = arith.addf %14, %16 : vector<8x128xf32>
    %18 = math.tanh %17 : vector<8x128xf32>
    %c0_15 = arith.constant 0 : index
    %c0_16 = arith.constant 0 : index
    %19 = vector.load %arg8[%c0_15, %c0_16] : memref<1x128xf32, #tpu.memory_space<vmem>>, vector<1x128xf32>
    %20 = vector.broadcast %19 : vector<1x128xf32> to vector<8x128xf32>
    %21 = arith.mulf %18, %20 : vector<8x128xf32>
    %cst_17 = arith.constant dense<0.000000e+00> : vector<8xf32>
    %22 = vector.multi_reduction <add>, %21, %cst_17 [1] : vector<8x128xf32> to vector<8xf32>
    %23 = vector.shape_cast %22 : vector<8xf32> to vector<8x1xf32>
    %24 = tpu.transpose %23, [1, 0] : vector<8x1xf32> -> vector<1x8xf32>
    %c0_18 = arith.constant 0 : index
    %c0_19 = arith.constant 0 : index
    %25 = memref.load %arg9[%c0_18, %c0_19] : memref<1x1xf32, #tpu.memory_space<smem>>
    %26 = vector.broadcast %25 : f32 to vector<1x8xf32>
    %27 = arith.addf %24, %26 : vector<1x8xf32>
    %28 = arith.negf %27 : vector<1x8xf32>
    %29 = math.exp %28 : vector<1x8xf32>
    %cst_20 = arith.constant 1.000000e+00 : f32
    %30 = vector.broadcast %cst_20 : f32 to vector<1x8xf32>
    %31 = arith.addf %30, %29 : vector<1x8xf32>
    %32 = arith.divf %30, %31 : vector<1x8xf32>
    %c0_21 = arith.constant 0 : index
    %c0_22 = arith.constant 0 : index
    %c0_23 = arith.constant 0 : index
    %33 = vector.load %arg10[%c0_21, %c0_22, %c0_23] : memref<1x1x8xf32, #tpu.memory_space<vmem>>, vector<1x1x8xf32>
    %34 = vector.shape_cast %33 : vector<1x1x8xf32> to vector<1x8xf32>
    %35 = vector.shape_cast %32 : vector<1x8xf32> to vector<1x1x8xf32>
    tpu.vector_store %arg10[%c0_21, %c0_22, %c0_23], %35 {strides = array<i32>} : memref<1x1x8xf32, #tpu.memory_space<vmem>>, vector<1x1x8xf32>,
    return
  }
  func.func @transform_0(%arg0: i32) -> (i32, i32) {
    %c0_i32 = arith.constant 0 : i32
    %c0_i32_0 = arith.constant 0 : i32
    return %arg0, %c0_i32 : i32, i32
  }
  func.func @transform_1(%arg0: i32) -> (i32, i32) {
    %c0_i32 = arith.constant 0 : i32
    %c0_i32_0 = arith.constant 0 : i32
    %c0_i32_1 = arith.constant 0 : i32
    return %c0_i32, %c0_i32_0 : i32, i32
  }
  func.func @transform_2(%arg0: i32) -> (i32, i32) {
    %c0_i32 = arith.constant 0 : i32
    %c0_i32_0 = arith.constant 0 : i32
    %c0_i32_1 = arith.constant 0 : i32
    return %c0_i32, %c0_i32_0 : i32, i32
  }
  func.func @transform_3(%arg0: i32) -> (i32, i32) {
    %c0_i32 = arith.constant 0 : i32
    %c0_i32_0 = arith.constant 0 : i32
    %c0_i32_1 = arith.constant 0 : i32
    return %c0_i32, %c0_i32_0 : i32, i32
  }
  func.func @transform_4(%arg0: i32) -> (i32, i32) {
    %c0_i32 = arith.constant 0 : i32
    %c0_i32_0 = arith.constant 0 : i32
    %c0_i32_1 = arith.constant 0 : i32
    return %c0_i32, %c0_i32_0 : i32, i32
  }
  func.func @transform_5(%arg0: i32) -> (i32, i32) {
    %c0_i32 = arith.constant 0 : i32
    %c0_i32_0 = arith.constant 0 : i32
    %c0_i32_1 = arith.constant 0 : i32
    return %c0_i32, %c0_i32_0 : i32, i32
  }
  func.func @transform_6(%arg0: i32) -> (i32, i32) {
    %c0_i32 = arith.constant 0 : i32
    %c0_i32_0 = arith.constant 0 : i32
    %c0_i32_1 = arith.constant 0 : i32
    return %c0_i32, %c0_i32_0 : i32, i32
  }
  func.func @transform_7(%arg0: i32) -> (i32, i32) {
    %c0_i32 = arith.constant 0 : i32
    %c0_i32_0 = arith.constant 0 : i32
    %c0_i32_1 = arith.constant 0 : i32
    return %c0_i32, %c0_i32_0 : i32, i32
  }
  func.func @transform_8(%arg0: i32) -> (i32, i32) {
    %c0_i32 = arith.constant 0 : i32
    %c0_i32_0 = arith.constant 0 : i32
    %c0_i32_1 = arith.constant 0 : i32
    return %c0_i32, %c0_i32_0 : i32, i32
  }
  func.func @transform_9(%arg0: i32) -> (i32, i32, i32) {
    %c0_i32 = arith.constant 0 : i32
    %c0_i32_0 = arith.constant 0 : i32
    %c0_i32_1 = arith.constant 0 : i32
    return %arg0, %c0_i32, %c0_i32_0 : i32, i32, i32
  }
}

</mosaic_0001>

<llo_original>
// kernel: tpu_custom_call.1
$region0: #{tpu_custom_call.1}
  #allocation0 [shape = 'u32[]', space=smem, size = 0x4, offset = 0x4, fixed_abs, tag = 'smem constant byte address 0x4 - core index']
  #allocation1 [shape = 'u32[144,128]{1,0:T(1,128)}', space=vmem, size = 0x12000, scoped, tag = 'internal scratch']
  #allocation2 [shape = 'f32[1,1]{1,0:T(1,128)S(6)}', space=smem, size = 0x200, scoped, tag = 'scoped memory for tpu_custom_call.1']
  %s0 = inlined_call_operand.hbm [shape: f32[8,32], index: 0, kind: input, shape index: {}]
  %s1 = inlined_call_operand.hbm [shape: f32[32,128], index: 1, kind: input, shape index: {}]
  %s2 = inlined_call_operand.vmem [shape: f32[1,128], index: 2, kind: input, shape index: {}]
  %s3 = inlined_call_operand.hbm [shape: f32[128,128], index: 3, kind: input, shape index: {}]
  %s4 = inlined_call_operand.vmem [shape: f32[1,128], index: 4, kind: input, shape index: {}]
  %s5 = inlined_call_operand.hbm [shape: f32[128,128], index: 5, kind: input, shape index: {}]
  %s6 = inlined_call_operand.vmem [shape: f32[1,128], index: 6, kind: input, shape index: {}]
  %s7 = inlined_call_operand.vmem [shape: f32[1,128], index: 7, kind: input, shape index: {}]
  %s8 = inlined_call_operand.<no memory space> [shape: f32[1,1], index: 8, kind: input, shape index: {}]
  %s9 = inlined_call_operand.hbm [shape: f32[1,1,8], index: 9, kind: output, shape index: {}]
  %s10 = sld [smem:[#allocation0]]
  $region62: #{tpu_custom_call.1} parent=0
    _
  %s12 = ssub.s32 1, %s10
  %s13 = scalar_select 0, %s12, %s10
  %14 = sst [smem:[#allocation2]] %s8
  $region1: #{tpu_custom_call.1} parent=0
    #allocation3 [shape = 'u8[4096]{0}', space=vmem, size = 0x1000, scoped, tag = 'input window, operand 0, single buffered']
    #allocation4 [shape = 's32[1]{0}', space=sflag, size = 0x4, scoped, tag = 'scoped memory for tpu_custom_call.1']
    #allocation5 [shape = 's32[1]{0}', space=sflag, size = 0x4, scoped, tag = 'scoped memory for tpu_custom_call.1']
    #allocation6 [shape = 'u8[16384]{0}', space=vmem, size = 0x4000, scoped, tag = 'input window, operand 1, single buffered']
    #allocation7 [shape = 's32[1]{0}', space=sflag, size = 0x4, scoped, tag = 'scoped memory for tpu_custom_call.1']
    #allocation8 [shape = 'u8[65536]{0}', space=vmem, size = 0x10000, scoped, tag = 'input window, operand 3, single buffered']
    #allocation9 [shape = 'u8[65536]{0}', space=vmem, size = 0x10000, scoped, tag = 'input window, operand 5, single buffered']
    #allocation10 [shape = 's32[1]{0}', space=sflag, size = 0x4, scoped, tag = 'scoped memory for tpu_custom_call.1']
    #allocation11 [shape = 'u8[512]{0}', space=vmem, size = 0x400, scoped, tag = 'output window, operand 0, single buffered']
    %15 = vsyncpa [#allocation4], 0
    %16 = vsyncpa [#allocation7], 0
    %17 = vsyncpa [#allocation10], 0
    %18 = vsyncpa [#allocation5], 0
    // Predicated region
    $region2: #{tpu_custom_call.1} parent=1 // pred_check
      _
    $region3: #{tpu_custom_call.1} parent=1 // pred_check_branch
      %20 = sbr.rel (0) target = $region5
    $region4: #{tpu_custom_call.1} parent=1 // pred_region
      %s22 = ssub.s32 128, 128
      %23 = vsyncadd [#allocation4], %s22
      %s25 = sshll.u32 [#allocation3], 4
      %s26 = int_to_ptr.vmem [resolvable:$true] %s25
      %28 = dma.hbm_to_vmem [thread:$0]  %s0, 128, %s26, [#allocation4]
    $region5: #{tpu_custom_call.1} parent=1 // pred_fallthru
      _
    // Predicated region
    $region6: #{tpu_custom_call.1} parent=1 // pred_check
      _
    $region7: #{tpu_custom_call.1} parent=1 // pred_check_branch
      %30 = sbr.rel (0) target = $region9
    $region8: #{tpu_custom_call.1} parent=1 // pred_region
      %s32 = ssub.s32 512, 512
      %33 = vsyncadd [#allocation7], %s32
      %s34 = sshll.u32 [#allocation6], 4
      %s35 = int_to_ptr.vmem [resolvable:$true] %s34
      %40 = dma.hbm_to_vmem [thread:$0]  %s1, 512, %s35, [#allocation7], 128, 128, 8
    $region9: #{tpu_custom_call.1} parent=1 // pred_fallthru
      _
    // Predicated region
    $region10: #{tpu_custom_call.1} parent=1 // pred_check
      _
    $region11: #{tpu_custom_call.1} parent=1 // pred_check_branch
      %42 = sbr.rel (0) target = $region13
    $region12: #{tpu_custom_call.1} parent=1 // pred_region
      _
    $region13: #{tpu_custom_call.1} parent=1 // pred_fallthru
      _
    // Predicated region
    $region14: #{tpu_custom_call.1} parent=1 // pred_check
      _
    $region15: #{tpu_custom_call.1} parent=1 // pred_check_branch
      %44 = sbr.rel (0) target = $region17
    $region16: #{tpu_custom_call.1} parent=1 // pred_region
      %s46 = ssub.s32 2048, 2048
      %47 = vsyncadd [#allocation7], %s46
      %s48 = sshll.u32 [#allocation8], 4
      %s49 = int_to_ptr.vmem [resolvable:$true] %s48
      %54 = dma.hbm_to_vmem [thread:$0]  %s3, 2048, %s49, [#allocation7], 128, 128, 8
    $region17: #{tpu_custom_call.1} parent=1 // pred_fallthru
      _
    // Predicated region
    $region18: #{tpu_custom_call.1} parent=1 // pred_check
      _
    $region19: #{tpu_custom_call.1} parent=1 // pred_check_branch
      %56 = sbr.rel (0) target = $region21
    $region20: #{tpu_custom_call.1} parent=1 // pred_region
      _
    $region21: #{tpu_custom_call.1} parent=1 // pred_fallthru
      _
    // Predicated region
    $region22: #{tpu_custom_call.1} parent=1 // pred_check
      _
    $region23: #{tpu_custom_call.1} parent=1 // pred_check_branch
      %58 = sbr.rel (0) target = $region25
    $region24: #{tpu_custom_call.1} parent=1 // pred_region
      %s60 = ssub.s32 2048, 2048
      %61 = vsyncadd [#allocation10], %s60
      %s62 = sshll.u32 [#allocation9], 4
      %s63 = int_to_ptr.vmem [resolvable:$true] %s62
      %68 = dma.hbm_to_vmem [thread:$0]  %s5, 2048, %s63, [#allocation10], 128, 128, 8
    $region25: #{tpu_custom_call.1} parent=1 // pred_fallthru
      _
    // Predicated region
    $region26: #{tpu_custom_call.1} parent=1 // pred_check
      _
    $region27: #{tpu_custom_call.1} parent=1 // pred_check_branch
      %70 = sbr.rel (0) target = $region29
    $region28: #{tpu_custom_call.1} parent=1 // pred_region
      _
    $region29: #{tpu_custom_call.1} parent=1 // pred_fallthru
      _
    // Predicated region
    $region30: #{tpu_custom_call.1} parent=1 // pred_check
      _
    $region31: #{tpu_custom_call.1} parent=1 // pred_check_branch
      %72 = sbr.rel (0) target = $region33
    $region32: #{tpu_custom_call.1} parent=1 // pred_region
      _
    $region33: #{tpu_custom_call.1} parent=1 // pred_fallthru
      _
    // Predicated region
    $region34: #{tpu_custom_call.1} parent=1 // pred_check
      _
    $region35: #{tpu_custom_call.1} parent=1 // pred_check_branch
      %74 = sbr.rel (0) target = $region37
    $region36: #{tpu_custom_call.1} parent=1 // pred_region
      _
    $region37: #{tpu_custom_call.1} parent=1 // pred_fallthru
      _
    // Predicated region
    $region38: #{tpu_custom_call.1} parent=1 // pred_check
      _
    $region39: #{tpu_custom_call.1} parent=1 // pred_check_branch
      %76 = sbr.rel (0) target = $region41
    $region40: #{tpu_custom_call.1} parent=1 // pred_region
      %77 = dma.done [#allocation4], 128
    $region41: #{tpu_custom_call.1} parent=1 // pred_fallthru
      _
    // Predicated region
    $region42: #{tpu_custom_call.1} parent=1 // pred_check
      _
    $region43: #{tpu_custom_call.1} parent=1 // pred_check_branch
      %79 = sbr.rel (0) target = $region45
    $region44: #{tpu_custom_call.1} parent=1 // pred_region
      %80 = dma.done [#allocation7], 512
    $region45: #{tpu_custom_call.1} parent=1 // pred_fallthru
      _
    // Predicated region
    $region46: #{tpu_custom_call.1} parent=1 // pred_check
      _
    $region47: #{tpu_custom_call.1} parent=1 // pred_check_branch
      %82 = sbr.rel (0) target = $region49
    $region48: #{tpu_custom_call.1} parent=1 // pred_region
      %83 = dma.done [#allocation7], 2048
    $region49: #{tpu_custom_call.1} parent=1 // pred_fallthru
      _
    // Predicated region
    $region50: #{tpu_custom_call.1} parent=1 // pred_check
      _
    $region51: #{tpu_custom_call.1} parent=1 // pred_check_branch
      %85 = sbr.rel (0) target = $region53
    $region52: #{tpu_custom_call.1} parent=1 // pred_region
      %86 = dma.done [#allocation10], 2048
    $region53: #{tpu_custom_call.1} parent=1 // pred_fallthru
      _
    %v87 = vld [vmem:[#allocation3] sm:$0xff]
    %v88 = vld [vmem:[#allocation6] sm:$0xff]
    %v89 = vld [vmem:[#allocation6 + $0x8] sm:$0xff]
    %v90 = vld [vmem:[#allocation6 + $0x10] sm:$0xff]
    %v91 = vld [vmem:[#allocation6 + $0x18] sm:$0xff]
    %v92 = vld [vmem:[%s2] sm:$0x1]
    %v94 = vlaneseq
    %v95 = vshrl.u32 %v94, 7
    %v96 = vsub.s32 0, %v95
    %v97 = vrot.slane %v92, %v96
    %vm99 = vcmask 261120
    %v101 = vsel %vm99, %v87, 0
    %103 = vmatprep.subr.mxu0 0.0
    %104 = vmatpush1.msra.mxu0 %v88
    %105 = vmatprep.subr.mxu0 0.0
    %106 = vmatpush1.msra.mxu0 %v89
    %107 = vmatprep.subr.mxu0 0.0
    %108 = vmatpush1.msra.mxu0 %v90
    %109 = vmatprep.subr.mxu0 0.0
    %110 = vmatpush1.msra.mxu0 %v91
    %111 = vmatprep.subr.mxu0 0.0
    %112 = vmatpush1.msra.mxu0 0.0
    %113 = vmatprep.subr.mxu0 0.0
    %114 = vmatpush1.msra.mxu0 0.0
    %115 = vmatprep.subr.mxu0 0.0
    %116 = vmatpush1.msra.mxu0 0.0
    %117 = vmatprep.subr.mxu0 0.0
    %118 = vmatpush1.msra.mxu0 0.0
    %119 = vmatprep.subr.mxu0 0.0
    %120 = vmatpush1.msra.mxu0 0.0
    %121 = vmatprep.subr.mxu0 0.0
    %122 = vmatpush1.msra.mxu0 0.0
    %123 = vmatprep.subr.mxu0 0.0
    %124 = vmatpush1.msra.mxu0 0.0
    %125 = vmatprep.subr.mxu0 0.0
    %126 = vmatpush1.msra.mxu0 0.0
    %127 = vmatprep.subr.mxu0 0.0
    %128 = vmatpush1.msra.mxu0 0.0
    %129 = vmatprep.subr.mxu0 0.0
    %130 = vmatpush1.msra.mxu0 0.0
    %131 = vmatprep.subr.mxu0 0.0
    %132 = vmatpush1.msra.mxu0 0.0
    %133 = vmatprep.subr.mxu0 0.0
    %134 = vmatpush1.msra.mxu0 0.0
    %135 = vmatprep.subr.mxu0 0.0
    %136 = vmatpush1.msra.mxu0 0.0
    %137 = vmatprep.subr.mxu0 0.0
    %138 = vmatpush1.msra.mxu0 0.0
    %139 = vmatprep.subr.mxu0 0.0
    %140 = vmatpush1.msra.mxu0 0.0
    %141 = vmatprep.subr.mxu0 0.0
    %142 = vmatpush1.msra.mxu0 0.0
    %143 = vmatprep.subr.mxu0 0.0
    %144 = vmatpush1.msra.mxu0 0.0
    %145 = vmatprep.subr.mxu0 0.0
    %146 = vmatpush1.msra.mxu0 0.0
    %147 = vmatprep.subr.mxu0 0.0
    %148 = vmatpush1.msra.mxu0 0.0
    %149 = vmatprep.subr.mxu0 0.0
    %150 = vmatpush1.msra.mxu0 0.0
    %151 = vmatprep.subr.mxu0 0.0
    %152 = vmatpush1.msra.mxu0 0.0
    %153 = vmatprep.subr.mxu0 0.0
    %154 = vmatpush1.msra.mxu0 0.0
    %155 = vmatprep.subr.mxu0 0.0
    %156 = vmatpush1.msra.mxu0 0.0
    %157 = vmatprep.subr.mxu0 0.0
    %158 = vmatpush1.msra.mxu0 0.0
    %159 = vmatprep.subr.mxu0 0.0
    %160 = vmatpush1.msra.mxu0 0.0
    %161 = vmatprep.subr.mxu0 0.0
    %162 = vmatpush1.msra.mxu0 0.0
    %163 = vmatprep.subr.mxu0 0.0
    %164 = vmatpush1.msra.mxu0 0.0
    %165 = vmatprep.subr.mxu0 0.0
    %166 = vmatpush1.msra.mxu0 0.0
    %167 = vmatprep.mubr.f32.mxu0 0.0
    %168 = vmatmul.mubr.f32.gmra.mrb[0].mxu0 %v101
    %v169 = vpop.f32.mrb[0].mxu0
    %v170 = vadd.f32 %v97, %v169
    %v171 = vpop.f32.mrb[0].mxu0
    %172 = vdwg.mxu0
    %v173 = vtanh.pop %v170
    %v174 = vld [vmem:[#allocation8] sm:$0xff]
    %v175 = vld [vmem:[#allocation8 + $0x8] sm:$0xff]
    %v176 = vld [vmem:[#allocation8 + $0x10] sm:$0xff]
    %v177 = vld [vmem:[#allocation8 + $0x18] sm:$0xff]
    %v178 = vld [vmem:[#allocation8 + $0x20] sm:$0xff]
    %v179 = vld [vmem:[#allocation8 + $0x28] sm:$0xff]
    %v180 = vld [vmem:[#allocation8 + $0x30] sm:$0xff]
    %v181 = vld [vmem:[#allocation8 + $0x38] sm:$0xff]
    %v182 = vld [vmem:[#allocation8 + $0x40] sm:$0xff]
    %v183 = vld [vmem:[#allocation8 + $0x48] sm:$0xff]
    %v184 = vld [vmem:[#allocation8 + $0x50] sm:$0xff]
    %v185 = vld [vmem:[#allocation8 + $0x58] sm:$0xff]
    %v186 = vld [vmem:[#allocation8 + $0x60] sm:$0xff]
    %v187 = vld [vmem:[#allocation8 + $0x68] sm:$0xff]
    %v188 = vld [vmem:[#allocation8 + $0x70] sm:$0xff]
    %v189 = vld [vmem:[#allocation8 + $0x78] sm:$0xff]
    %v190 = vld [vmem:[%s4] sm:$0x1]
    %v192 = vlaneseq
    %v193 = vshrl.u32 %v192, 7
    %v194 = vsub.s32 0, %v193
    %v195 = vrot.slane %v190, %v194
    %197 = vmatprep.subr.mxu0 0.0
    %198 = vmatpush1.msra.mxu0 %v174
    %199 = vmatprep.subr.mxu0 0.0
    %200 = vmatpush1.msra.mxu0 %v175
    %201 = vmatprep.subr.mxu0 0.0
    %202 = vmatpush1.msra.mxu0 %v176
    %203 = vmatprep.subr.mxu0 0.0
    %204 = vmatpush1.msra.mxu0 %v177
    %205 = vmatprep.subr.mxu0 0.0
    %206 = vmatpush1.msra.mxu0 %v178
    %207 = vmatprep.subr.mxu0 0.0
    %208 = vmatpush1.msra.mxu0 %v179
    %209 = vmatprep.subr.mxu0 0.0
    %210 = vmatpush1.msra.mxu0 %v180
    %211 = vmatprep.subr.mxu0 0.0
    %212 = vmatpush1.msra.mxu0 %v181
    %213 = vmatprep.subr.mxu0 0.0
    %214 = vmatpush1.msra.mxu0 %v182
    %215 = vmatprep.subr.mxu0 0.0
    %216 = vmatpush1.msra.mxu0 %v183
    %217 = vmatprep.subr.mxu0 0.0
    %218 = vmatpush1.msra.mxu0 %v184
    %219 = vmatprep.subr.mxu0 0.0
    %220 = vmatpush1.msra.mxu0 %v185
    %221 = vmatprep.subr.mxu0 0.0
    %222 = vmatpush1.msra.mxu0 %v186
    %223 = vmatprep.subr.mxu0 0.0
    %224 = vmatpush1.msra.mxu0 %v187
    %225 = vmatprep.subr.mxu0 0.0
    %226 = vmatpush1.msra.mxu0 %v188
    %227 = vmatprep.subr.mxu0 0.0
    %228 = vmatpush1.msra.mxu0 %v189
    %229 = vmatprep.subr.mxu0 0.0
    %230 = vmatpush1.msra.mxu0 0.0
    %231 = vmatprep.subr.mxu0 0.0
    %232 = vmatpush1.msra.mxu0 0.0
    %233 = vmatprep.subr.mxu0 0.0
    %234 = vmatpush1.msra.mxu0 0.0
    %235 = vmatprep.subr.mxu0 0.0
    %236 = vmatpush1.msra.mxu0 0.0
    %237 = vmatprep.subr.mxu0 0.0
    %238 = vmatpush1.msra.mxu0 0.0
    %239 = vmatprep.subr.mxu0 0.0
    %240 = vmatpush1.msra.mxu0 0.0
    %241 = vmatprep.subr.mxu0 0.0
    %242 = vmatpush1.msra.mxu0 0.0
    %243 = vmatprep.subr.mxu0 0.0
    %244 = vmatpush1.msra.mxu0 0.0
    %245 = vmatprep.subr.mxu0 0.0
    %246 = vmatpush1.msra.mxu0 0.0
    %247 = vmatprep.subr.mxu0 0.0
    %248 = vmatpush1.msra.mxu0 0.0
    %249 = vmatprep.subr.mxu0 0.0
    %250 = vmatpush1.msra.mxu0 0.0
    %251 = vmatprep.subr.mxu0 0.0
    %252 = vmatpush1.msra.mxu0 0.0
    %253 = vmatprep.subr.mxu0 0.0
    %254 = vmatpush1.msra.mxu0 0.0
    %255 = vmatprep.subr.mxu0 0.0
    %256 = vmatpush1.msra.mxu0 0.0
    %257 = vmatprep.subr.mxu0 0.0
    %258 = vmatpush1.msra.mxu0 0.0
    %259 = vmatprep.subr.mxu0 0.0
    %260 = vmatpush1.msra.mxu0 0.0
    %261 = vmatprep.mubr.f32.mxu0 0.0
    %262 = vmatmul.mubr.f32.gmra.mrb[0].mxu0 %v173
    %v263 = vpop.f32.mrb[0].mxu0
    %v264 = vadd.f32 %v195, %v263
    %v265 = vpop.f32.mrb[0].mxu0
    %266 = vdwg.mxu0
    %v267 = vtanh.pop %v264
    %v268 = vld [vmem:[#allocation9] sm:$0xff]
    %v269 = vld [vmem:[#allocation9 + $0x8] sm:$0xff]
    %v270 = vld [vmem:[#allocation9 + $0x10] sm:$0xff]
    %v271 = vld [vmem:[#allocation9 + $0x18] sm:$0xff]
    %v272 = vld [vmem:[#allocation9 + $0x20] sm:$0xff]
    %v273 = vld [vmem:[#allocation9 + $0x28] sm:$0xff]
    %v274 = vld [vmem:[#allocation9 + $0x30] sm:$0xff]
    %v275 = vld [vmem:[#allocation9 + $0x38] sm:$0xff]
    %v276 = vld [vmem:[#allocation9 + $0x40] sm:$0xff]
    %v277 = vld [vmem:[#allocation9 + $0x48] sm:$0xff]
    %v278 = vld [vmem:[#allocation9 + $0x50] sm:$0xff]
    %v279 = vld [vmem:[#allocation9 + $0x58] sm:$0xff]
    %v280 = vld [vmem:[#allocation9 + $0x60] sm:$0xff]
    %v281 = vld [vmem:[#allocation9 + $0x68] sm:$0xff]
    %v282 = vld [vmem:[#allocation9 + $0x70] sm:$0xff]
    %v283 = vld [vmem:[#allocation9 + $0x78] sm:$0xff]
    %v284 = vld [vmem:[%s6] sm:$0x1]
    %v286 = vlaneseq
    %v287 = vshrl.u32 %v286, 7
    %v288 = vsub.s32 0, %v287
    %v289 = vrot.slane %v284, %v288
    %291 = vmatprep.subr.mxu0 0.0
    %292 = vmatpush1.msra.mxu0 %v268
    %293 = vmatprep.subr.mxu0 0.0
    %294 = vmatpush1.msra.mxu0 %v269
    %295 = vmatprep.subr.mxu0 0.0
    %296 = vmatpush1.msra.mxu0 %v270
    %297 = vmatprep.subr.mxu0 0.0
    %298 = vmatpush1.msra.mxu0 %v271
    %299 = vmatprep.subr.mxu0 0.0
    %300 = vmatpush1.msra.mxu0 %v272
    %301 = vmatprep.subr.mxu0 0.0
    %302 = vmatpush1.msra.mxu0 %v273
    %303 = vmatprep.subr.mxu0 0.0
    %304 = vmatpush1.msra.mxu0 %v274
    %305 = vmatprep.subr.mxu0 0.0
    %306 = vmatpush1.msra.mxu0 %v275
    %307 = vmatprep.subr.mxu0 0.0
    %308 = vmatpush1.msra.mxu0 %v276
    %309 = vmatprep.subr.mxu0 0.0
    %310 = vmatpush1.msra.mxu0 %v277
    %311 = vmatprep.subr.mxu0 0.0
    %312 = vmatpush1.msra.mxu0 %v278
    %313 = vmatprep.subr.mxu0 0.0
    %314 = vmatpush1.msra.mxu0 %v279
    %315 = vmatprep.subr.mxu0 0.0
    %316 = vmatpush1.msra.mxu0 %v280
    %317 = vmatprep.subr.mxu0 0.0
    %318 = vmatpush1.msra.mxu0 %v281
    %319 = vmatprep.subr.mxu0 0.0
    %320 = vmatpush1.msra.mxu0 %v282
    %321 = vmatprep.subr.mxu0 0.0
    %322 = vmatpush1.msra.mxu0 %v283
    %323 = vmatprep.subr.mxu0 0.0
    %324 = vmatpush1.msra.mxu0 0.0
    %325 = vmatprep.subr.mxu0 0.0
    %326 = vmatpush1.msra.mxu0 0.0
    %327 = vmatprep.subr.mxu0 0.0
    %328 = vmatpush1.msra.mxu0 0.0
    %329 = vmatprep.subr.mxu0 0.0
    %330 = vmatpush1.msra.mxu0 0.0
    %331 = vmatprep.subr.mxu0 0.0
    %332 = vmatpush1.msra.mxu0 0.0
    %333 = vmatprep.subr.mxu0 0.0
    %334 = vmatpush1.msra.mxu0 0.0
    %335 = vmatprep.subr.mxu0 0.0
    %336 = vmatpush1.msra.mxu0 0.0
    %337 = vmatprep.subr.mxu0 0.0
    %338 = vmatpush1.msra.mxu0 0.0
    %339 = vmatprep.subr.mxu0 0.0
    %340 = vmatpush1.msra.mxu0 0.0
    %341 = vmatprep.subr.mxu0 0.0
    %342 = vmatpush1.msra.mxu0 0.0
    %343 = vmatprep.subr.mxu0 0.0
    %344 = vmatpush1.msra.mxu0 0.0
    %345 = vmatprep.subr.mxu0 0.0
    %346 = vmatpush1.msra.mxu0 0.0
    %347 = vmatprep.subr.mxu0 0.0
    %348 = vmatpush1.msra.mxu0 0.0
    %349 = vmatprep.subr.mxu0 0.0
    %350 = vmatpush1.msra.mxu0 0.0
    %351 = vmatprep.subr.mxu0 0.0
    %352 = vmatpush1.msra.mxu0 0.0
    %353 = vmatprep.subr.mxu0 0.0
    %354 = vmatpush1.msra.mxu0 0.0
    %355 = vmatprep.mubr.f32.mxu0 0.0
    %356 = vmatmul.mubr.f32.gmra.mrb[0].mxu0 %v267
    %v357 = vpop.f32.mrb[0].mxu0
    %v358 = vadd.f32 %v289, %v357
    %v359 = vpop.f32.mrb[0].mxu0
    %360 = vdwg.mxu0
    %v361 = vtanh.pop %v358
    %v362 = vld [vmem:[%s7] sm:$0x1]
    %v364 = vlaneseq
    %v365 = vshrl.u32 %v364, 7
    %v366 = vsub.s32 0, %v365
    %v367 = vrot.slane %v362, %v366
    %v369 = vmul.f32 %v361, %v367
    %370 = vadd.xlane.f32.xlu0 %v369
    %v371 = vpop.xlane.xlu0 %370
    %372 = vxpose.xlu0.b32.start [1/16] %v371, 128
    %373 = vxpose.xlu0.b32.cont [2/16] 0.0, 128
    %374 = vxpose.xlu0.b32.cont [3/16] 0.0, 128
    %375 = vxpose.xlu0.b32.cont [4/16] 0.0, 128
    %376 = vxpose.xlu0.b32.cont [5/16] 0.0, 128
    %377 = vxpose.xlu0.b32.cont [6/16] 0.0, 128
    %378 = vxpose.xlu0.b32.cont [7/16] 0.0, 128
    %379 = vxpose.xlu0.b32.cont [8/16] 0.0, 128
    %380 = vxpose.xlu0.b32.cont [9/16] 0.0, 128
    %381 = vxpose.xlu0.b32.cont [10/16] 0.0, 128
    %382 = vxpose.xlu0.b32.cont [11/16] 0.0, 128
    %383 = vxpose.xlu0.b32.cont [12/16] 0.0, 128
    %384 = vxpose.xlu0.b32.cont [13/16] 0.0, 128
    %385 = vxpose.xlu0.b32.cont [14/16] 0.0, 128
    %386 = vxpose.xlu0.b32.cont [15/16] 0.0, 128
    %387 = vxpose.xlu0.b32.end [16/16] 0.0, 128
    %v388 = vpop.trf.xlu0
    %v389 = vpop.trf.xlu0
    %v390 = vpop.trf.xlu0
    %v391 = vpop.trf.xlu0
    %v392 = vpop.trf.xlu0
    %v393 = vpop.trf.xlu0
    %v394 = vpop.trf.xlu0
    %v395 = vpop.trf.xlu0
    %v396 = vpop.trf.xlu0
    %v397 = vpop.trf.xlu0
    %v398 = vpop.trf.xlu0
    %v399 = vpop.trf.xlu0
    %v400 = vpop.trf.xlu0
    %v401 = vpop.trf.xlu0
    %v402 = vpop.trf.xlu0
    %v403 = vpop.trf.xlu0
    %s404 = sld [smem:[#allocation2]]
    %v405 = vstv %s404
    %v406 = vadd.f32 %v388, %v405
    %v407 = vxor.u32 %v406, 2147483648
    %v408 = vmul.f32 %v407, 1.442695
    %v409 = vpow.pop %v408
    %v410 = vadd.f32 %v409, 1.0
    %v411 = vrcp.pop %v410
    %v412 = vmul.f32 1.0, %v411
    %vm413 = vcmask 57344
    %414 = vst.msk [vmem:[#allocation11] sm:$0x1] %vm413, %v412
    // Predicated region
    $region54: #{tpu_custom_call.1} parent=1 // pred_check
      _
    $region55: #{tpu_custom_call.1} parent=1 // pred_check_branch
      %416 = sbr.rel (0) target = $region57
    $region56: #{tpu_custom_call.1} parent=1 // pred_region
      %s418 = ssub.s32 16, 16
      %419 = vsyncadd [#allocation5], %s418
      %s421 = sshll.u32 [#allocation11], 4
      %s422 = int_to_ptr.vmem [resolvable:$true] %s421
      %424 = dma.vmem_to_hbm [thread:$0]  %s422, 16, %s9, [#allocation5]
    $region57: #{tpu_custom_call.1} parent=1 // pred_fallthru
      _
    // Predicated region
    $region58: #{tpu_custom_call.1} parent=1 // pred_check
      _
    $region59: #{tpu_custom_call.1} parent=1 // pred_check_branch
      %426 = sbr.rel (0) target = $region61
    $region60: #{tpu_custom_call.1} parent=1 // pred_region
      %427 = dma.done [#allocation5], 16
    $region61: #{tpu_custom_call.1} parent=1 // pred_fallthru
      _
    %428 = vsyncpa [#allocation4], 1
    %429 = vsyncpa [#allocation7], 1
    %430 = vsyncpa [#allocation10], 1
    %431 = vsyncpa [#allocation5], 1

</llo_original>
